<compile_context>
chip_gen: v5e
topology: v5e:2x2
jax: 0.10.0
libtpu: 0.0.40
codegen_flags: <defaults>
</compile_context>

<pallas_src>
import functools

import jax
import jax.numpy as jnp
from jax import lax
from jax.experimental import pallas as pl
from jax.experimental.pallas import tpu as pltpu


def _cl_loss_kernel(bits_ref, seq_ref, logits_ref, label_ref, out_ref,
                    *, temperature, lambda_cl, supervised):
    x = seq_ref[...].astype(jnp.float32)                        # (B, D)
    bits = bits_ref[...]                                        # (B, D) int32

    # ---- dropout(0.5) twice: two independent masks from one bits draw ----
    keep1 = (bits & 1) != 0                                     # fair coin
    keep2 = (bits & 2) != 0                                     # independent bit
    # 1/(1-p) inverted-dropout rescale cancels in cosine similarity: omit it.
    z1 = jnp.where(keep1, x, 0.0)
    z2 = jnp.where(keep2, x, 0.0)

    # ---- row-normalize via rsqrt (eps guards a fully-dropped row) ----
    eps = 1e-12
    inv1 = lax.rsqrt(jnp.sum(z1 * z1, axis=1, keepdims=True) + eps)  # (B, 1)
    inv2 = lax.rsqrt(jnp.sum(z2 * z2, axis=1, keepdims=True) + eps)  # (B, 1)
    z1n = z1 * inv1
    z2n = z2 * inv2

    inv_t = 1.0 / temperature

    # ---- cosine-similarity matrix on the MXU (bf16 in, f32 accumulate) ----
    sim = lax.dot_general(z1n.astype(jnp.bfloat16), z2n.astype(jnp.bfloat16),
                          (((1,), (1,)), ((), ())),
                          preferred_element_type=jnp.float32)   # (B, B)
    row_sum = jnp.sum(jnp.exp(sim * inv_t), axis=1, keepdims=True)   # (B, 1)

    # Positive (diagonal) similarity directly -- no iota/eye mask needed.
    s_ii = jnp.sum(z1n * z2n, axis=1, keepdims=True) * inv_t    # (B, 1)
    pos = jnp.exp(s_ii)
    denom = row_sum - pos                                       # sum minus diag
    cl_terms = jnp.log(denom) - s_ii                            # = -log(pos/denom)
    cl_loss = jnp.mean(cl_terms)

    # ---- cross entropy (mean reduction, like nn.CrossEntropyLoss) ----
    logits = logits_ref[...].astype(jnp.float32)                # (B, C)
    label = label_ref[...]                                      # (B, 1) int32
    m = jnp.max(logits, axis=1, keepdims=True)
    lse = jnp.log(jnp.sum(jnp.exp(logits - m), axis=1, keepdims=True)) + m
    cls_iota = lax.broadcasted_iota(jnp.int32, logits.shape, 1)
    picked = jnp.sum(jnp.where(cls_iota == label, logits, 0.0),
                     axis=1, keepdims=True)                     # logits[i, y_i]
    ce_loss = jnp.mean(lse - picked)

    if supervised:
        loss = ce_loss + lambda_cl * cl_loss
    else:
        loss = lambda_cl * cl_loss

    out_ref[0] = loss
    out_ref[1] = ce_loss
    out_ref[2] = cl_loss


def cl_loss(logits, label, seq_feature, *, seed=0, temperature=0.5,
            lambda_cl=0.1, supervised=True):
    B, D = seq_feature.shape
    # One PRNG draw in the wrapper; kernel uses two independent bits of it.
    # TODO(synk): dropout draws are statistically equivalent to torch's, not
    # bit-identical (different PRNG stream).
    key = jax.random.PRNGKey(seed)
    bits = jax.random.bits(key, (B, D), dtype=jnp.uint32)
    bits = lax.bitcast_convert_type(bits, jnp.int32)
    label2d = label.astype(jnp.int32).reshape(B, 1)

    kernel = functools.partial(
        _cl_loss_kernel,
        temperature=float(temperature),
        lambda_cl=float(lambda_cl),
        supervised=bool(supervised),
    )

    out = pl.pallas_call(
        kernel,
        out_shape=jax.ShapeDtypeStruct((3,), jnp.float32),
        in_specs=[
            pl.BlockSpec(memory_space=pltpu.MemorySpace.VMEM),  # dropout bits
            pl.BlockSpec(memory_space=pltpu.MemorySpace.VMEM),  # seq_feature
            pl.BlockSpec(memory_space=pltpu.MemorySpace.VMEM),  # logits
            pl.BlockSpec(memory_space=pltpu.MemorySpace.VMEM),  # label (B,1)
        ],
        out_specs=pl.BlockSpec(memory_space=pltpu.MemorySpace.SMEM),
    )(bits, seq_feature, logits, label2d)

    return {"loss": out[0], "ce_loss": out[1], "cl_loss": out[2]}


if __name__ == "__main__":
    key = jax.random.PRNGKey(0)
    k_seq, k_log, k_lab = jax.random.split(key, 3)

    B, D, C = 8, 32, 10
    seq_feature = jax.random.normal(k_seq, (B, D), dtype=jnp.float32)
    logits = jax.random.normal(k_log, (B, C), dtype=jnp.float32)
    label = jax.random.randint(k_lab, (B,), 0, C, dtype=jnp.int32)

    result = cl_loss(logits, label, seq_feature, seed=0,
                     temperature=0.5, lambda_cl=0.1, supervised=True)
    jax.block_until_ready(result)
    print("KERNEL_OK")
</pallas_src>

<mosaic_0001>
module attributes {stable_mosaic.version = 11 : i64} {
  func.func @_cl_loss_kernel(%arg0: memref<8x32xi32, #tpu.memory_space<vmem>>, %arg1: memref<8x32xf32, #tpu.memory_space<vmem>>, %arg2: memref<8x10xf32, #tpu.memory_space<vmem>>, %arg3: memref<8x1xi32, #tpu.memory_space<vmem>>, %arg4: memref<3xf32, #tpu.memory_space<smem>>) attributes {dimension_semantics = [], scalar_prefetch = 0 : i64, scratch_operands = 0 : i64, tpu.core_type = #tpu.core_type<tc>} {
    %c0 = arith.constant 0 : index
    %c0_0 = arith.constant 0 : index
    %0 = vector.load %arg1[%c0, %c0_0] : memref<8x32xf32, #tpu.memory_space<vmem>>, vector<8x32xf32>
    %c0_1 = arith.constant 0 : index
    %c0_2 = arith.constant 0 : index
    %1 = vector.load %arg0[%c0_1, %c0_2] : memref<8x32xi32, #tpu.memory_space<vmem>>, vector<8x32xi32>
    %c1_i32 = arith.constant 1 : i32
    %2 = vector.broadcast %c1_i32 : i32 to vector<8x32xi32>
    %3 = arith.andi %1, %2 : vector<8x32xi32>
    %c0_i32 = arith.constant 0 : i32
    %4 = vector.broadcast %c0_i32 : i32 to vector<8x32xi32>
    %5 = arith.cmpi ne, %3, %4 : vector<8x32xi32>
    %c2_i32 = arith.constant 2 : i32
    %6 = vector.broadcast %c2_i32 : i32 to vector<8x32xi32>
    %7 = arith.andi %1, %6 : vector<8x32xi32>
    %c0_i32_3 = arith.constant 0 : i32
    %8 = vector.broadcast %c0_i32_3 : i32 to vector<8x32xi32>
    %9 = arith.cmpi ne, %7, %8 : vector<8x32xi32>
    %cst = arith.constant 0.000000e+00 : f32
    %10 = vector.broadcast %cst : f32 to vector<8x32xf32>
    %11 = arith.select %5, %0, %10 : vector<8x32xi1>, vector<8x32xf32>
    %cst_4 = arith.constant 0.000000e+00 : f32
    %12 = vector.broadcast %cst_4 : f32 to vector<8x32xf32>
    %13 = arith.select %9, %0, %12 : vector<8x32xi1>, vector<8x32xf32>
    %14 = arith.mulf %11, %11 : vector<8x32xf32>
    %cst_5 = arith.constant dense<0.000000e+00> : vector<8xf32>
    %15 = vector.multi_reduction <add>, %14, %cst_5 [1] : vector<8x32xf32> to vector<8xf32>
    %16 = vector.shape_cast %15 : vector<8xf32> to vector<8x1xf32>
    %cst_6 = arith.constant 9.99999996E-13 : f32
    %17 = vector.broadcast %cst_6 : f32 to vector<8x1xf32>
    %18 = arith.addf %16, %17 : vector<8x1xf32>
    %19 = math.rsqrt %18 : vector<8x1xf32>
    %20 = arith.mulf %13, %13 : vector<8x32xf32>
    %cst_7 = arith.constant dense<0.000000e+00> : vector<8xf32>
    %21 = vector.multi_reduction <add>, %20, %cst_7 [1] : vector<8x32xf32> to vector<8xf32>
    %22 = vector.shape_cast %21 : vector<8xf32> to vector<8x1xf32>
    %cst_8 = arith.constant 9.99999996E-13 : f32
    %23 = vector.broadcast %cst_8 : f32 to vector<8x1xf32>
    %24 = arith.addf %22, %23 : vector<8x1xf32>
    %25 = math.rsqrt %24 : vector<8x1xf32>
    %26 = vector.broadcast %19 : vector<8x1xf32> to vector<8x32xf32>
    %27 = arith.mulf %11, %26 : vector<8x32xf32>
    %28 = vector.broadcast %25 : vector<8x1xf32> to vector<8x32xf32>
    %29 = arith.mulf %13, %28 : vector<8x32xf32>
    %30 = arith.truncf %27 : vector<8x32xf32> to vector<8x32xbf16>
    %31 = arith.truncf %29 : vector<8x32xf32> to vector<8x32xbf16>
    %cst_9 = arith.constant dense<0.000000e+00> : vector<8x8xf32>
    %32 = tpu.matmul %30, %31, %cst_9 {dimension_numbers = #tpu.dot_dimension_numbers<[1], [1], [0], [0], [0, 0, 1, 0], [], []>} : vector<8x32xbf16>, vector<8x32xbf16>, vector<8x8xf32> -> vector<8x8xf32>
    %cst_10 = arith.constant 2.000000e+00 : f32
    %33 = vector.broadcast %cst_10 : f32 to vector<8x8xf32>
    %34 = arith.mulf %32, %33 : vector<8x8xf32>
    %35 = math.exp %34 : vector<8x8xf32>
    %cst_11 = arith.constant dense<0.000000e+00> : vector<8xf32>
    %36 = vector.multi_reduction <add>, %35, %cst_11 [1] : vector<8x8xf32> to vector<8xf32>
    %37 = vector.shape_cast %36 : vector<8xf32> to vector<8x1xf32>
    %38 = arith.mulf %27, %29 : vector<8x32xf32>
    %cst_12 = arith.constant dense<0.000000e+00> : vector<8xf32>
    %39 = vector.multi_reduction <add>, %38, %cst_12 [1] : vector<8x32xf32> to vector<8xf32>
    %40 = vector.shape_cast %39 : vector<8xf32> to vector<8x1xf32>
    %cst_13 = arith.constant 2.000000e+00 : f32
    %41 = vector.broadcast %cst_13 : f32 to vector<8x1xf32>
    %42 = arith.mulf %40, %41 : vector<8x1xf32>
    %43 = math.exp %42 : vector<8x1xf32>
    %44 = arith.subf %37, %43 : vector<8x1xf32>
    %45 = math.log %44 : vector<8x1xf32>
    %46 = arith.subf %45, %42 : vector<8x1xf32>
    %47 = vector.shape_cast %46 : vector<8x1xf32> to vector<1x8x1xf32>
    %cst_14 = arith.constant dense<0.000000e+00> : vector<1xf32>
    %48 = vector.multi_reduction <add>, %47, %cst_14 [1, 2] : vector<1x8x1xf32> to vector<1xf32>
    %49 = vector.shape_cast %48 : vector<1xf32> to vector<1x1x1xf32>
    %50 = vector.extract %49[0, 0, 0] : f32 from vector<1x1x1xf32>
    %cst_15 = arith.constant 8.000000e+00 : f32
    %51 = arith.divf %50, %cst_15 : f32
    %c0_16 = arith.constant 0 : index
    %c0_17 = arith.constant 0 : index
    %52 = vector.load %arg2[%c0_16, %c0_17] : memref<8x10xf32, #tpu.memory_space<vmem>>, vector<8x10xf32>
    %c0_18 = arith.constant 0 : index
    %c0_19 = arith.constant 0 : index
    %53 = vector.load %arg3[%c0_18, %c0_19] : memref<8x1xi32, #tpu.memory_space<vmem>>, vector<8x1xi32>
    %cst_20 = arith.constant dense<0xFF800000> : vector<8xf32>
    %54 = vector.multi_reduction <maximumf>, %52, %cst_20 [1] : vector<8x10xf32> to vector<8xf32>
    %55 = vector.shape_cast %54 : vector<8xf32> to vector<8x1xf32>
    %56 = vector.broadcast %55 : vector<8x1xf32> to vector<8x10xf32>
    %57 = arith.subf %52, %56 : vector<8x10xf32>
    %58 = math.exp %57 : vector<8x10xf32>
    %cst_21 = arith.constant dense<0.000000e+00> : vector<8xf32>
    %59 = vector.multi_reduction <add>, %58, %cst_21 [1] : vector<8x10xf32> to vector<8xf32>
    %60 = vector.shape_cast %59 : vector<8xf32> to vector<8x1xf32>
    %61 = math.log %60 : vector<8x1xf32>
    %62 = arith.addf %61, %55 : vector<8x1xf32>
    %63 = tpu.iota {dimensions = array<i32: 1>} : vector<8x10xi32>
    %64 = vector.broadcast %53 : vector<8x1xi32> to vector<8x10xi32>
    %65 = arith.cmpi eq, %63, %64 : vector<8x10xi32>
    %cst_22 = arith.constant 0.000000e+00 : f32
    %66 = vector.broadcast %cst_22 : f32 to vector<8x10xf32>
    %67 = arith.select %65, %52, %66 : vector<8x10xi1>, vector<8x10xf32>
    %cst_23 = arith.constant dense<0.000000e+00> : vector<8xf32>
    %68 = vector.multi_reduction <add>, %67, %cst_23 [1] : vector<8x10xf32> to vector<8xf32>
    %69 = vector.shape_cast %68 : vector<8xf32> to vector<8x1xf32>
    %70 = arith.subf %62, %69 : vector<8x1xf32>
    %71 = vector.shape_cast %70 : vector<8x1xf32> to vector<1x8x1xf32>
    %cst_24 = arith.constant dense<0.000000e+00> : vector<1xf32>
    %72 = vector.multi_reduction <add>, %71, %cst_24 [1, 2] : vector<1x8x1xf32> to vector<1xf32>
    %73 = vector.shape_cast %72 : vector<1xf32> to vector<1x1x1xf32>
    %74 = vector.extract %73[0, 0, 0] : f32 from vector<1x1x1xf32>
    %cst_25 = arith.constant 8.000000e+00 : f32
    %75 = arith.divf %74, %cst_25 : f32
    %cst_26 = arith.constant 1.000000e-01 : f32
    %76 = arith.mulf %cst_26, %51 : f32
    %77 = arith.addf %75, %76 : f32
    %c0_27 = arith.constant 0 : index
    %78 = memref.load %arg4[%c0_27] : memref<3xf32, #tpu.memory_space<smem>>
    memref.store %77, %arg4[%c0_27] : memref<3xf32, #tpu.memory_space<smem>>
    %c1 = arith.constant 1 : index
    %79 = memref.load %arg4[%c1] : memref<3xf32, #tpu.memory_space<smem>>
    memref.store %75, %arg4[%c1] : memref<3xf32, #tpu.memory_space<smem>>
    %c2 = arith.constant 2 : index
    %80 = memref.load %arg4[%c2] : memref<3xf32, #tpu.memory_space<smem>>
    memref.store %51, %arg4[%c2] : memref<3xf32, #tpu.memory_space<smem>>
    return
  }
}

</mosaic_0001>

<llo_original>
// kernel: tpu_custom_call.1
$region0: #{tpu_custom_call.1}
  #allocation0 [shape = 'u32[]', space=smem, size = 0x4, offset = 0x4, fixed_abs, tag = 'smem constant byte address 0x4 - core index']
  #allocation1 [shape = 'u32[72,128]{1,0:T(1,128)}', space=vmem, size = 0x9000, scoped, tag = 'internal scratch']
  %s0 = inlined_call_operand.vmem [shape: s32[8,32], index: 0, kind: input, shape index: {}]
  %s1 = inlined_call_operand.hbm [shape: f32[8,32], index: 1, kind: input, shape index: {}]
  %s2 = inlined_call_operand.hbm [shape: f32[8,10], index: 2, kind: input, shape index: {}]
  %s3 = inlined_call_operand.vmem [shape: s32[8,1], index: 3, kind: input, shape index: {}]
  %s4 = inlined_call_operand.hbm [shape: f32[3], index: 4, kind: output, shape index: {}]
  %s5 = sld [smem:[#allocation0]]
  $region34: #{tpu_custom_call.1} parent=0
    _
  %s7 = ssub.s32 1, %s5
  %s8 = scalar_select 0, %s7, %s5
  $region1: #{tpu_custom_call.1} parent=0
    #allocation2 [shape = 'u8[4096]{0}', space=vmem, size = 0x1000, scoped, tag = 'input window, operand 1, single buffered']
    #allocation3 [shape = 's32[1]{0}', space=sflag, size = 0x4, scoped, tag = 'scoped memory for tpu_custom_call.1']
    #allocation4 [shape = 's32[1]{0}', space=sflag, size = 0x4, scoped, tag = 'scoped memory for tpu_custom_call.1']
    #allocation5 [shape = 'u8[4096]{0}', space=vmem, size = 0x1000, scoped, tag = 'input window, operand 2, single buffered']
    #allocation6 [shape = 's32[1]{0}', space=sflag, size = 0x4, scoped, tag = 'scoped memory for tpu_custom_call.1']
    #allocation7 [shape = 'u8[512]{0}', space=smem, size = 0x200, scoped, tag = 'output window, operand 0, single buffered']
    %9 = vsyncpa [#allocation3], 0
    %10 = vsyncpa [#allocation6], 0
    %11 = vsyncpa [#allocation4], 0
    // Predicated region
    $region2: #{tpu_custom_call.1} parent=1 // pred_check
      _
    $region3: #{tpu_custom_call.1} parent=1 // pred_check_branch
      %13 = sbr.rel (0) target = $region5
    $region4: #{tpu_custom_call.1} parent=1 // pred_region
      _
    $region5: #{tpu_custom_call.1} parent=1 // pred_fallthru
      _
    // Predicated region
    $region6: #{tpu_custom_call.1} parent=1 // pred_check
      _
    $region7: #{tpu_custom_call.1} parent=1 // pred_check_branch
      %15 = sbr.rel (0) target = $region9
    $region8: #{tpu_custom_call.1} parent=1 // pred_region
      %17 = vsyncadd [#allocation3], 0
      %s19 = sshll.u32 %s1, 4
      %s20 = int_to_ptr.hbm [resolvable:$true] %s19
      %s21 = sshll.u32 [#allocation2], 4
      %s22 = int_to_ptr.vmem [resolvable:$true] %s21
      %24 = dma.hbm_to_vmem [thread:$0]  %s20, 128, %s22, [#allocation3]
    $region9: #{tpu_custom_call.1} parent=1 // pred_fallthru
      _
    // Predicated region
    $region10: #{tpu_custom_call.1} parent=1 // pred_check
      _
    $region11: #{tpu_custom_call.1} parent=1 // pred_check_branch
      %26 = sbr.rel (0) target = $region13
    $region12: #{tpu_custom_call.1} parent=1 // pred_region
      %28 = vsyncadd [#allocation6], 0
      %s30 = sshll.u32 %s2, 4
      %s31 = int_to_ptr.hbm [resolvable:$true] %s30
      %s32 = sshll.u32 [#allocation5], 4
      %s33 = int_to_ptr.vmem [resolvable:$true] %s32
      %35 = dma.hbm_to_vmem [thread:$0]  %s31, 128, %s33, [#allocation6]
    $region13: #{tpu_custom_call.1} parent=1 // pred_fallthru
      _
    // Predicated region
    $region14: #{tpu_custom_call.1} parent=1 // pred_check
      _
    $region15: #{tpu_custom_call.1} parent=1 // pred_check_branch
      %37 = sbr.rel (0) target = $region17
    $region16: #{tpu_custom_call.1} parent=1 // pred_region
      _
    $region17: #{tpu_custom_call.1} parent=1 // pred_fallthru
      _
    // Predicated region
    $region18: #{tpu_custom_call.1} parent=1 // pred_check
      _
    $region19: #{tpu_custom_call.1} parent=1 // pred_check_branch
      %39 = sbr.rel (0) target = $region21
    $region20: #{tpu_custom_call.1} parent=1 // pred_region
      %41 = dma.done [#allocation3], 128
    $region21: #{tpu_custom_call.1} parent=1 // pred_fallthru
      _
    // Predicated region
    $region22: #{tpu_custom_call.1} parent=1 // pred_check
      _
    $region23: #{tpu_custom_call.1} parent=1 // pred_check_branch
      %43 = sbr.rel (0) target = $region25
    $region24: #{tpu_custom_call.1} parent=1 // pred_region
      %45 = dma.done [#allocation6], 128
    $region25: #{tpu_custom_call.1} parent=1 // pred_fallthru
      _
    %v47 = vld [vmem:[#allocation2] sm:$0xff]
    %v48 = vld [vmem:[%s0] sm:$0xff]
    %v49 = vand.u32 %v48, 1
    %vm50 = vcmp.ne.s32.totalorder %v49, 0
    %v51 = vand.u32 %v48, 2
    %vm52 = vcmp.ne.s32.totalorder %v51, 0
    %v53 = vsel %vm50, %v47, 0.0
    %v54 = vsel %vm52, %v47, 0.0
    %v55 = vmul.f32 %v53, %v53
    %vm56 = vcmask 261120
    %v57 = vsel %vm56, %v55, 0.0
    %58 = vadd.xlane.f32.xlu0 %v57
    %v59 = vpop.xlane.xlu0 %58
    %v60 = vadd.f32 %v59, 1e-12
    %v61 = vrsqrt.pop %v60
    %v62 = vmul.f32 %v61, %v60
    %v63 = vmul.f32 %v62, %v61
    %v64 = vmul.f32 0.5, %v63
    %v65 = vsub.f32 1.5, %v64
    %v66 = vmul.f32 %v61, %v65
    %vm67 = vweird.f32 %v60
    %vm68 = vweird.f32 %v61
    %vm69 = vmor %vm67, %vm68
    %v70 = vsel %vm69, %v61, %v66
    %v71 = vmul.f32 %v54, %v54
    %v72 = vsel %vm56, %v71, 0.0
    %73 = vadd.xlane.f32.xlu0 %v72
    %v74 = vpop.xlane.xlu0 %73
    %v75 = vadd.f32 %v74, 1e-12
    %v76 = vrsqrt.pop %v75
    %v77 = vmul.f32 %v76, %v75
    %v78 = vmul.f32 %v77, %v76
    %v79 = vmul.f32 0.5, %v78
    %v80 = vsub.f32 1.5, %v79
    %v81 = vmul.f32 %v76, %v80
    %vm82 = vweird.f32 %v75
    %vm83 = vweird.f32 %v76
    %vm84 = vmor %vm82, %vm83
    %v85 = vsel %vm84, %v76, %v81
    %v86 = vmul.f32 %v53, %v70
    %v87 = vmul.f32 %v54, %v85
    %v88 = vpack.c.bf16 %v86, %v86
    %v89 = vpack.c.bf16 %v87, %v87
    %v91 = vsel %vm56, %v88, 0
    %v94 = vsel %vm56, %v89, 0
    %96 = vmatpush.bf16.xpose.msra.mxu0 0
    %97 = vmatpush.bf16.xpose.msra.mxu0 0
    %98 = vmatpush.bf16.xpose.msra.mxu0 0
    %99 = vmatpush.bf16.xpose.msra.mxu0 0
    %100 = vmatpush.bf16.xpose.msra.mxu0 0
    %101 = vmatpush.bf16.xpose.msra.mxu0 0
    %102 = vmatpush.bf16.xpose.msra.mxu0 0
    %103 = vmatpush.bf16.xpose.msra.mxu0 %v94
    %104 = vmatmul.bf16.gmra.mxu0 %v91
    %v105 = vpop.f32.mrf.mxu0
    %v106 = vadd.f32 0.0, %v105
    %v107 = vpop.f32.mrf.mxu0
    %108 = vdwg.mxu0
    %v109 = vmul.f32 %v106, 2.0
    %v110 = vmul.f32 %v109, 1.442695
    %v111 = vpow.pop %v110
    %vm112 = vcmask 64512
    %v113 = vsel %vm112, %v111, 0.0
    %114 = vadd.xlane.f32.xlu0 %v113
    %v115 = vpop.xlane.xlu0 %114
    %v116 = vmul.f32 %v86, %v87
    %v117 = vsel %vm56, %v116, 0.0
    %118 = vadd.xlane.f32.xlu0 %v117
    %v119 = vpop.xlane.xlu0 %118
    %v120 = vmul.f32 %v119, 2.0
    %v121 = vmul.f32 %v120, 1.442695
    %v122 = vpow.pop %v121
    %v123 = vsub.f32 %v115, %v122
    %v124 = vlog2.pop %v123
    %v125 = vmul.f32 %v124, 0.6931472
    %v126 = vsub.f32 %v125, %v120
    %vm127 = vcmask 7168
    %v128 = vsel %vm127, %v126, 0.0
    %129 = vadd.xlane.f32.xlu0 %v128
    %v130 = vpop.xlane.xlu0 %129
    %v131 = vrot.slane %v130, 4
    %v132 = vadd.f32 %v130, %v131
    %v133 = vrot.slane %v132, 2
    %v134 = vadd.f32 %v132, %v133
    %v135 = vrot.slane %v134, 1
    %v136 = vadd.f32 %v134, %v135
    %s137 = vtos %v136
    %v138 = vrcp.pop 8.0
    %v139 = vmul.f32 8.0, %v138
    %v140 = vsub.f32 1.0, %v139
    %v141 = vmul.f32 %v138, %v140
    %v142 = vadd.f32 %v138, %v141
    %vm143 = vweird.f32 %v138
    %v144 = vsel %vm143, %v138, %v142
    %s145 = vtos %v144
    %s146 = smul.f32 %s137, %s145
    %v147 = vld [vmem:[#allocation5] sm:$0xff]
    %v148 = vld [vmem:[%s3] sm:$0xff]
    %vm149 = vcmask 80896
    %v150 = vsel %vm149, %v147, -inf
    %151 = vmax.xlane.f32.xlu0 %v150
    %v152 = vpop.xlane.xlu0 %151
    %v153 = vsub.f32 %v147, %v152
    %v154 = vmul.f32 %v153, 1.442695
    %v155 = vpow.pop %v154
    %v156 = vsel %vm149, %v155, 0.0
    %157 = vadd.xlane.f32.xlu0 %v156
    %v158 = vpop.xlane.xlu0 %157
    %v159 = vlog2.pop %v158
    %v160 = vmul.f32 %v159, 0.6931472
    %v161 = vadd.f32 %v160, %v152
    %v162 = vlaneseq
    %v163 = vand.u32 %v162, 127
    %164 = vset.pattern.permute.xlu0 0
    %165 = vperm.xlu0 %164, %v148
    %v166 = vpop.permute.xlu0 %165
    %vm167 = vcmp.eq.s32.totalorder %v163, %v166
    %v168 = vsel %vm167, %v147, 0.0
    %v169 = vsel %vm149, %v168, 0.0
    %170 = vadd.xlane.f32.xlu0 %v169
    %v171 = vpop.xlane.xlu0 %170
    %v172 = vsub.f32 %v161, %v171
    %v173 = vsel %vm127, %v172, 0.0
    %174 = vadd.xlane.f32.xlu0 %v173
    %v175 = vpop.xlane.xlu0 %174
    %v176 = vrot.slane %v175, 4
    %v177 = vadd.f32 %v175, %v176
    %v178 = vrot.slane %v177, 2
    %v179 = vadd.f32 %v177, %v178
    %v180 = vrot.slane %v179, 1
    %v181 = vadd.f32 %v179, %v180
    %s182 = vtos %v181
    %v183 = vrcp.pop 8.0
    %v184 = vmul.f32 8.0, %v183
    %v185 = vsub.f32 1.0, %v184
    %v186 = vmul.f32 %v183, %v185
    %v187 = vadd.f32 %v183, %v186
    %vm188 = vweird.f32 %v183
    %v189 = vsel %vm188, %v183, %v187
    %s190 = vtos %v189
    %s191 = smul.f32 %s182, %s190
    %s192 = smul.f32 %s146, 0.1
    %s193 = sadd.f32 %s191, %s192
    %s194 = scalar_lea.smem [#allocation7], 0
    %195 = sst [smem:[%s194]] %s193
    %s196 = scalar_lea.smem [#allocation7], 1
    %197 = sst [smem:[%s196]] %s191
    %s198 = scalar_lea.smem [#allocation7], 2
    %199 = sst [smem:[%s198]] %s146
    // Predicated region
    $region26: #{tpu_custom_call.1} parent=1 // pred_check
      _
    $region27: #{tpu_custom_call.1} parent=1 // pred_check_branch
      %201 = sbr.rel (0) target = $region29
    $region28: #{tpu_custom_call.1} parent=1 // pred_region
      %203 = vsyncadd [#allocation4], 0
      %s205 = sshll.u32 %s4, 4
      %s206 = int_to_ptr.hbm [resolvable:$true] %s205
      %208 = dma.smem_to_hbm [#allocation7], 16, %s206, [#allocation4]
    $region29: #{tpu_custom_call.1} parent=1 // pred_fallthru
      _
    // Predicated region
    $region30: #{tpu_custom_call.1} parent=1 // pred_check
      _
    $region31: #{tpu_custom_call.1} parent=1 // pred_check_branch
      %210 = sbr.rel (0) target = $region33
    $region32: #{tpu_custom_call.1} parent=1 // pred_region
      %212 = dma.done [#allocation4], 16
    $region33: #{tpu_custom_call.1} parent=1 // pred_fallthru
      _
    %213 = sfence
    %214 = vsyncpa [#allocation3], 1
    %215 = vsyncpa [#allocation6], 1
    %216 = vsyncpa [#allocation4], 1

</llo_original>
